<compile_context>
chip_gen: v7x
topology: tpu7x:2x2x1
jax: 0.10.0
libtpu: 0.0.40
codegen_flags: <defaults>
</compile_context>

<pallas_src>
import functools

import jax
import jax.numpy as jnp
from jax import lax
from jax.experimental import pallas as pl
from jax.experimental.pallas import tpu as pltpu

EPS = 1e-5
GUARD = 128          # zero guard block at each end of a frame (lane-aligned)


# ---------------------------------------------------------------------------
# In-kernel helper: one-pass, masked, training-mode BN folded to scale/shift
# ---------------------------------------------------------------------------
def _masked_bn_scale_shift(y, mask, n_valid, gamma_col, beta_col):
    """y: [C, N] f32; mask: [1, N] (1.0 valid / 0.0 inter-batch garbage).

    Returns per-channel (scale, shift) columns so bn(y) == y*scale + shift.
    Biased batch stats over the n_valid valid columns, one pass (sum, sumsq),
    all in f32.
    """
    ym = y * mask
    s1 = jnp.sum(ym, axis=1, keepdims=True)        # [C, 1]
    s2 = jnp.sum(ym * y, axis=1, keepdims=True)    # [C, 1]
    inv_n = 1.0 / float(n_valid)
    mean = s1 * inv_n
    var = jnp.maximum(s2 * inv_n - mean * mean, 0.0)   # clamp one-pass cancellation
    scale = gamma_col * lax.rsqrt(var + EPS)
    shift = beta_col - mean * scale
    return scale, shift


# ---------------------------------------------------------------------------
# Fused BlockCNN kernel
# ---------------------------------------------------------------------------
def block_cnn_kernel(
    x_ref,       # [B, C_in, L]  f32        input activations
    wcat_ref,    # [2*C_out, K*C_in] bf16   conv1 ; shortcut weights (k-major, c-minor)
    w2_ref,      # [C_out, K*C_out]  bf16   conv2 weights (k-major, c-minor)
    bn_ref,      # [6*C_out, 1]  f32        rows: g1 | gs | be1 | bes | g2 | be2
    out_ref,     # [C_out, B*Fseg] f32      lane-dense output (incl. garbage cols)
    xp_ref,      # scratch [C_in,  GUARD + B*F1   + GUARD] bf16  padded input frame
    yp_ref,      # scratch [C_out, GUARD + B*Fseg + GUARD] bf16  padded conv2-input frame
    *, B, C_in, C_out, L, K, stride, pad, pad2, Fseg, l1, l2,
):
    f32 = jnp.float32
    bf16 = jnp.bfloat16
    F1 = Fseg * stride          # per-batch frame width (input coords)
    N = B * Fseg                # lane-dense column count of every conv output

    # ---- build the 128-aligned, zero-guarded bf16 input frame ---------------
    # pad-only zeroing: leading guard + per-batch tails (last tail merges the
    # trailing guard).  Interior data stores start on 128-aligned columns.
    W1 = xp_ref.shape[1]
    xp_ref[:, 0:GUARD] = jnp.zeros((C_in, GUARD), bf16)
    for b in range(B):                      # B small & static -> unrolled
        lo = GUARD + b * F1
        xp_ref[:, lo : lo + L] = x_ref[b].astype(bf16)
        hi = GUARD + (b + 1) * F1 if (b + 1) < B else W1
        if hi > lo + L:
            xp_ref[:, lo + L : hi] = jnp.zeros((C_in, hi - (lo + L)), bf16)
    xp = xp_ref[...]

    # ---- conv1 + shortcut: ONE bf16 matmul, f32 accumulation ----------------
    # tap k starts at GUARD + k - pad (padding offset pushed into the tap start,
    # left-pad zeros come from the guard / previous-batch zero tail).
    taps = []
    for k in range(K):
        start = GUARD + k - pad
        if stride == 1:
            taps.append(xp[:, start : start + N])
        else:
            # TODO(synk): for stride>1 pre-decimate phases during the frame fill
            #             instead of lane-strided slices.
            taps.append(xp[:, start : start + (N - 1) * stride + 1 : stride])
    xcol = jnp.concatenate(taps, axis=0)                               # [K*C_in, N] bf16
    ycat = jnp.dot(wcat_ref[...], xcol, preferred_element_type=f32)    # [2*C_out, N] f32

    # fused training-mode BN for conv1 (rows 0:C_out) and shortcut (C_out:2C_out)
    col = lax.broadcasted_iota(jnp.int32, (1, N), 1) % Fseg
    mask1 = (col < l1).astype(f32)
    gcat = bn_ref[0 : 2 * C_out, :]
    bcat = bn_ref[2 * C_out : 4 * C_out, :]
    sc1, sh1 = _masked_bn_scale_shift(ycat, mask1, B * l1, gcat, bcat)
    ycat = ycat * sc1 + sh1

    y1 = jnp.maximum(ycat[:C_out, :], 0.0)    # main branch: ReLU
    s = ycat[C_out:, :]                       # shortcut branch: no ReLU

    # ---- build the conv2 input frame (valid columns only, bf16) -------------
    W2 = yp_ref.shape[1]
    yp_ref[:, 0:GUARD] = jnp.zeros((C_out, GUARD), bf16)
    for b in range(B):
        lo = GUARD + b * Fseg
        yp_ref[:, lo : lo + l1] = y1[:, b * Fseg : b * Fseg + l1].astype(bf16)
        hi = GUARD + (b + 1) * Fseg if (b + 1) < B else W2
        if hi > lo + l1:
            yp_ref[:, lo + l1 : hi] = jnp.zeros((C_out, hi - (lo + l1)), bf16)
    yp = yp_ref[...]

    # ---- conv2 (stride 1): ONE bf16 matmul, f32 accumulation ----------------
    taps2 = [yp[:, GUARD + k - pad2 : GUARD + k - pad2 + N] for k in range(K)]
    ycol2 = jnp.concatenate(taps2, axis=0)                             # [K*C_out, N] bf16
    y2 = jnp.dot(w2_ref[...], ycol2, preferred_element_type=f32)       # [C_out, N] f32

    mask2 = (col < l2).astype(f32)
    g2 = bn_ref[4 * C_out : 5 * C_out, :]
    b2 = bn_ref[5 * C_out : 6 * C_out, :]
    sc2, sh2 = _masked_bn_scale_shift(y2, mask2, B * l2, g2, b2)
    y2 = y2 * sc2 + sh2

    # ---- residual add + ReLU: ONE lane-dense, 128-multiple store ------------
    out_ref[...] = jnp.maximum(y2 + s, 0.0).astype(out_ref.dtype)


# ---------------------------------------------------------------------------
# Host-side wrapper
# ---------------------------------------------------------------------------
def _flatten_conv_weight(w):
    """[C_out, C_in, K] -> [C_out, K*C_in], columns ordered (k major, c minor)."""
    C_out, C_in, K = w.shape
    return jnp.transpose(w, (0, 2, 1)).reshape(C_out, K * C_in)


def _round_up(v, m):
    return -(-v // m) * m


def block_cnn_forward(x, params, *, kernel_size, stride, padding):
    """x: [B, C_in, L] float32 -> [B, C_out, L_out] float32."""
    x = x.astype(jnp.float32)
    B, C_in, L = x.shape
    C_out = params["w1"].shape[0]
    K = kernel_size
    pad, pad2 = padding, 1   # cnn2 hard-codes stride=1, padding=1

    l1 = (L + 2 * pad - K) // stride + 1
    l2 = l1 + 2 * pad2 - K + 1
    # Residual add requires matching lengths (true for kernel_size=3 as in the module).
    assert l1 == l2, "residual add requires cnn2 to preserve length (kernel_size=3)"

    # Per-batch segment width in conv-output coordinates, multiple of 128 so
    # both frames and the output are lane-aligned per batch.
    need = max(l1, l1 + pad2, -(-(L + pad) // stride))
    Fseg = _round_up(need, 128)
    F1 = Fseg * stride
    W1 = GUARD + B * F1 + GUARD
    W2 = GUARD + B * Fseg + GUARD

    # conv1 + shortcut fused along C_out.  Conv biases intentionally omitted:
    # training-mode BN subtracts the per-channel batch mean, which cancels a
    # per-channel bias exactly.  Weights shipped as bf16 for the MXU.
    wcat = jnp.concatenate(
        [_flatten_conv_weight(params["w1"]), _flatten_conv_weight(params["ws"])],
        axis=0,
    ).astype(jnp.bfloat16)                                             # [2*C_out, K*C_in]
    w2f = _flatten_conv_weight(params["w2"]).astype(jnp.bfloat16)      # [C_out, K*C_out]

    # all per-channel BN params packed into a single f32 column vector
    bn = jnp.concatenate(
        [params["g1"], params["gs"], params["be1"], params["bes"],
         params["g2"], params["be2"]]
    ).astype(jnp.float32).reshape(6 * C_out, 1)

    kernel = functools.partial(
        block_cnn_kernel,
        B=B, C_in=C_in, C_out=C_out, L=L, K=K,
        stride=stride, pad=pad, pad2=pad2, Fseg=Fseg, l1=l1, l2=l2,
    )

    def full_spec(a):
        nd = a.ndim
        return pl.BlockSpec(a.shape, lambda i, _nd=nd: (0,) * _nd)

    flops = 2 * (2 * C_out * K * C_in + C_out * K * C_out) * B * l1
    bytes_accessed = (x.size * 4 + wcat.size * 2 + w2f.size * 2 + bn.size * 4
                      + C_out * B * Fseg * 4)
    cost = pl.CostEstimate(flops=flops, transcendentals=3 * C_out,
                           bytes_accessed=bytes_accessed)

    out_flat = pl.pallas_call(
        kernel,
        out_shape=jax.ShapeDtypeStruct((C_out, B * Fseg), jnp.float32),
        grid=(1,),  # BN couples all of (B, L): single program, all resident in VMEM
        in_specs=[full_spec(x), full_spec(wcat), full_spec(w2f), full_spec(bn)],
        out_specs=pl.BlockSpec((C_out, B * Fseg), lambda i: (0, 0)),
        scratch_shapes=[
            pltpu.VMEM((C_in, W1), jnp.bfloat16),    # padded input frame (bf16)
            pltpu.VMEM((C_out, W2), jnp.bfloat16),   # padded conv2-input frame (bf16)
        ],
        compiler_params=pltpu.CompilerParams(
            dimension_semantics=("arbitrary",),
            # explicit budget: fits v7x's 64 MiB physical VMEM with headroom
            vmem_limit_bytes=32 * 1024 * 1024,
        ),
        cost_estimate=cost,
    )(x, wcat, w2f, bn)

    # lane-dense [C_out, B*Fseg] -> strip garbage cols -> PyTorch [B, C_out, l2]
    out = out_flat.reshape(C_out, B, Fseg)[:, :, :l2]
    return jnp.transpose(out, (1, 0, 2))


# ---------------------------------------------------------------------------
# Parameters + pure-JAX reference (correctness sanity check)
# ---------------------------------------------------------------------------
def init_params(key, in_channels, out_channels, kernel_size):
    """Deterministic synthetic parameters (shapes mirror the PyTorch module)."""
    ks = jax.random.split(key, 8)
    scale1 = 1.0 / (in_channels * kernel_size) ** 0.5
    scale2 = 1.0 / (out_channels * kernel_size) ** 0.5
    return {
        "w1": jax.random.normal(ks[0], (out_channels, in_channels, kernel_size), jnp.float32) * scale1,
        "b1": jax.random.normal(ks[1], (out_channels,), jnp.float32) * scale1,  # cancelled by BN
        "g1": jnp.ones((out_channels,), jnp.float32),
        "be1": jnp.zeros((out_channels,), jnp.float32),
        "w2": jax.random.normal(ks[2], (out_channels, out_channels, kernel_size), jnp.float32) * scale2,
        "b2": jax.random.normal(ks[3], (out_channels,), jnp.float32) * scale2,   # cancelled by BN
        "g2": jnp.ones((out_channels,), jnp.float32),
        "be2": jnp.zeros((out_channels,), jnp.float32),
        "ws": jax.random.normal(ks[4], (out_channels, in_channels, kernel_size), jnp.float32) * scale1,
        "bs": jax.random.normal(ks[5], (out_channels,), jnp.float32) * scale1,   # cancelled by BN
        "gs": jnp.ones((out_channels,), jnp.float32),
        "bes": jnp.zeros((out_channels,), jnp.float32),
    }


def _reference_forward(x, params, *, kernel_size, stride, padding, matmul_dtype=None):
    """Plain-JAX reference matching the PyTorch forward (training-mode BN).

    matmul_dtype=None      -> pure f32 (PyTorch semantics)
    matmul_dtype=bfloat16  -> conv operands rounded to bf16, f32 accumulation
                              (mirrors the kernel's MXU precision)
    """
    def conv1d(xin, w, b, stride, padding):
        xp = jnp.pad(xin, ((0, 0), (0, 0), (padding, padding)))
        if matmul_dtype is not None:
            xp = xp.astype(matmul_dtype)
            w = w.astype(matmul_dtype)
        K = w.shape[-1]
        L_out = (xin.shape[-1] + 2 * padding - K) // stride + 1
        cols = jnp.stack(
            [xp[:, :, k : k + stride * (L_out - 1) + 1 : stride] for k in range(K)],
            axis=-1,
        )  # [B, C_in, L_out, K]
        y = jnp.einsum("bclk,ock->bol", cols, w,
                       preferred_element_type=jnp.float32)
        return y + b[None, :, None]

    def bn(y, g, be):
        mean = jnp.mean(y, axis=(0, 2), keepdims=True)
        var = jnp.mean((y - mean) ** 2, axis=(0, 2), keepdims=True)
        return (y - mean) * lax.rsqrt(var + EPS) * g[None, :, None] + be[None, :, None]

    y = jax.nn.relu(bn(conv1d(x, params["w1"], params["b1"], stride, padding),
                       params["g1"], params["be1"]))
    y = bn(conv1d(y, params["w2"], params["b2"], 1, 1), params["g2"], params["be2"])
    s = bn(conv1d(x, params["ws"], params["bs"], stride, padding),
           params["gs"], params["bes"])
    return jax.nn.relu(y + s)


if __name__ == "__main__":
    # Small shapes consistent with the module: BlockCNN(in=4, out=8, kernel=3, stride=1, pad=1)
    B, C_IN, C_OUT, L = 2, 4, 8, 16
    KSIZE, STRIDE, PADDING = 3, 1, 1

    key = jax.random.PRNGKey(0)
    kx, kp = jax.random.split(key)
    x = jax.random.normal(kx, (B, C_IN, L), jnp.float32)
    params = init_params(kp, C_IN, C_OUT, KSIZE)

    out = block_cnn_forward(x, params, kernel_size=KSIZE, stride=STRIDE, padding=PADDING)
    jax.block_until_ready(out)

    assert out.shape == (B, C_OUT, L), out.shape
    assert bool(jnp.all(out >= 0.0))  # final ReLU

    # Tight structural check against a reference with the same bf16 MXU precision.
    ref_bf16 = _reference_forward(x, params, kernel_size=KSIZE, stride=STRIDE,
                                  padding=PADDING, matmul_dtype=jnp.bfloat16)
    assert bool(jnp.allclose(out, ref_bf16, atol=2e-3, rtol=2e-3)), \
        float(jnp.max(jnp.abs(out - ref_bf16)))

    # Looser check against the exact f32 PyTorch semantics (bf16 MXU rounding).
    ref_f32 = _reference_forward(x, params, kernel_size=KSIZE, stride=STRIDE,
                                 padding=PADDING)
    assert bool(jnp.allclose(out, ref_f32, atol=5e-2, rtol=5e-2)), \
        float(jnp.max(jnp.abs(out - ref_f32)))

    print("KERNEL_OK")
</pallas_src>

<mosaic_0001>
module attributes {stable_mosaic.version = 11 : i64} {
  func.func @block_cnn_kernel(%arg0: i32, %arg1: memref<2x4x16xf32, #tpu.memory_space<vmem>>, %arg2: memref<16x12xbf16, #tpu.memory_space<vmem>>, %arg3: memref<8x24xbf16, #tpu.memory_space<vmem>>, %arg4: memref<48x1xf32, #tpu.memory_space<vmem>>, %arg5: memref<8x256xf32, #tpu.memory_space<vmem>>, %arg6: memref<4x512xbf16, #tpu.memory_space<vmem>>, %arg7: memref<8x512xbf16, #tpu.memory_space<vmem>>) attributes {dimension_semantics = [#tpu.dimension_semantics<arbitrary>], iteration_bounds = array<i64: 1>, scalar_prefetch = 0 : i64, scratch_operands = 2 : i64, tpu.core_type = #tpu.core_type<tc>, window_params = [{pipeline_mode = #tpu.pipeline_mode<synchronous>, transform_indices = @transform_0, window_bounds = array<i64: 2, 4, 16>}, {pipeline_mode = #tpu.pipeline_mode<synchronous>, transform_indices = @transform_1, window_bounds = array<i64: 16, 12>}, {pipeline_mode = #tpu.pipeline_mode<synchronous>, transform_indices = @transform_2, window_bounds = array<i64: 8, 24>}, {pipeline_mode = #tpu.pipeline_mode<synchronous>, transform_indices = @transform_3, window_bounds = array<i64: 48, 1>}, {pipeline_mode = #tpu.pipeline_mode<synchronous>, transform_indices = @transform_4, window_bounds = array<i64: 8, 256>}]} {
    %cst = arith.constant 0.000000e+00 : bf16
    %0 = vector.broadcast %cst : bf16 to vector<4x128xbf16>
    %c0 = arith.constant 0 : index
    %c0_0 = arith.constant 0 : index
    %1 = vector.load %arg6[%c0, %c0_0] : memref<4x512xbf16, #tpu.memory_space<vmem>>, vector<4x128xbf16>
    tpu.vector_store %arg6[%c0, %c0_0], %0 {strides = array<i32>} : memref<4x512xbf16, #tpu.memory_space<vmem>>, vector<4x128xbf16>,
    %c0_1 = arith.constant 0 : index
    %c0_2 = arith.constant 0 : index
    %c0_3 = arith.constant 0 : index
    %2 = vector.load %arg1[%c0_1, %c0_2, %c0_3] : memref<2x4x16xf32, #tpu.memory_space<vmem>>, vector<1x4x16xf32>
    %3 = vector.shape_cast %2 : vector<1x4x16xf32> to vector<4x16xf32>
    %4 = arith.truncf %3 : vector<4x16xf32> to vector<4x16xbf16>
    %c0_4 = arith.constant 0 : index
    %c128 = arith.constant 128 : index
    %5 = vector.load %arg6[%c0_4, %c128] : memref<4x512xbf16, #tpu.memory_space<vmem>>, vector<4x16xbf16>
    tpu.vector_store %arg6[%c0_4, %c128], %4 {strides = array<i32>} : memref<4x512xbf16, #tpu.memory_space<vmem>>, vector<4x16xbf16>,
    %cst_5 = arith.constant 0.000000e+00 : bf16
    %6 = vector.broadcast %cst_5 : bf16 to vector<4x112xbf16>
    %c0_6 = arith.constant 0 : index
    %c144 = arith.constant 144 : index
    %7 = vector.load %arg6[%c0_6, %c144] : memref<4x512xbf16, #tpu.memory_space<vmem>>, vector<4x112xbf16>
    tpu.vector_store %arg6[%c0_6, %c144], %6 {strides = array<i32>} : memref<4x512xbf16, #tpu.memory_space<vmem>>, vector<4x112xbf16>,
    %c1 = arith.constant 1 : index
    %c0_7 = arith.constant 0 : index
    %c0_8 = arith.constant 0 : index
    %8 = vector.load %arg1[%c1, %c0_7, %c0_8] : memref<2x4x16xf32, #tpu.memory_space<vmem>>, vector<1x4x16xf32>
    %9 = vector.shape_cast %8 : vector<1x4x16xf32> to vector<4x16xf32>
    %10 = arith.truncf %9 : vector<4x16xf32> to vector<4x16xbf16>
    %c0_9 = arith.constant 0 : index
    %c256 = arith.constant 256 : index
    %11 = vector.load %arg6[%c0_9, %c256] : memref<4x512xbf16, #tpu.memory_space<vmem>>, vector<4x16xbf16>
    tpu.vector_store %arg6[%c0_9, %c256], %10 {strides = array<i32>} : memref<4x512xbf16, #tpu.memory_space<vmem>>, vector<4x16xbf16>,
    %cst_10 = arith.constant 0.000000e+00 : bf16
    %12 = vector.broadcast %cst_10 : bf16 to vector<4x240xbf16>
    %c0_11 = arith.constant 0 : index
    %c272 = arith.constant 272 : index
    %13 = vector.load %arg6[%c0_11, %c272] : memref<4x512xbf16, #tpu.memory_space<vmem>>, vector<4x240xbf16>
    tpu.vector_store %arg6[%c0_11, %c272], %12 {strides = array<i32>} : memref<4x512xbf16, #tpu.memory_space<vmem>>, vector<4x240xbf16>,
    %c0_12 = arith.constant 0 : index
    %c0_13 = arith.constant 0 : index
    %14 = vector.load %arg6[%c0_12, %c0_13] : memref<4x512xbf16, #tpu.memory_space<vmem>>, vector<4x512xbf16>
    %15 = vector.extract_strided_slice %14 {offsets = [0, 127], sizes = [4, 256], strides = [1, 1]} : vector<4x512xbf16> to vector<4x256xbf16>
    %16 = vector.extract_strided_slice %14 {offsets = [0, 128], sizes = [4, 256], strides = [1, 1]} : vector<4x512xbf16> to vector<4x256xbf16>
    %17 = vector.extract_strided_slice %14 {offsets = [0, 129], sizes = [4, 256], strides = [1, 1]} : vector<4x512xbf16> to vector<4x256xbf16>
    %18 = tpu.concatenate %15, %16, %17 in 0 : vector<4x256xbf16>, vector<4x256xbf16>, vector<4x256xbf16> -> vector<12x256xbf16>
    %c0_14 = arith.constant 0 : index
    %c0_15 = arith.constant 0 : index
    %19 = vector.load %arg2[%c0_14, %c0_15] : memref<16x12xbf16, #tpu.memory_space<vmem>>, vector<16x12xbf16>
    %cst_16 = arith.constant dense<0.000000e+00> : vector<16x256xf32>
    %20 = tpu.matmul %19, %18, %cst_16 {dimension_numbers = #tpu.dot_dimension_numbers<[1], [0], [0], [1], [0, 0, 1, 1], [], []>} : vector<16x12xbf16>, vector<12x256xbf16>, vector<16x256xf32> -> vector<16x256xf32>
    %21 = tpu.iota {dimensions = array<i32: 1>} : vector<1x256xi32>
    %c128_i32 = arith.constant 128 : i32
    %c0_i32 = arith.constant 0 : i32
    %22 = arith.cmpi eq, %c128_i32, %c0_i32 : i32
    %c1_i32 = arith.constant 1 : i32
    %23 = arith.select %22, %c1_i32, %c128_i32 : i32
    %24 = vector.broadcast %23 : i32 to vector<1x256xi32>
    %25 = arith.remsi %21, %24 : vector<1x256xi32>
    %c0_i32_17 = arith.constant 0 : i32
    %26 = vector.broadcast %c0_i32_17 : i32 to vector<1x256xi32>
    %27 = arith.cmpi ne, %25, %26 : vector<1x256xi32>
    %c0_i32_18 = arith.constant 0 : i32
    %28 = vector.broadcast %c0_i32_18 : i32 to vector<1x256xi32>
    %29 = arith.cmpi slt, %25, %28 : vector<1x256xi32>
    %c0_i32_19 = arith.constant 0 : i32
    %30 = arith.cmpi slt, %23, %c0_i32_19 : i32
    %31 = vector.broadcast %30 : i1 to vector<1x256xi1>
    %32 = vector.broadcast %31 : vector<1x256xi1> to vector<1x256xi1>
    %33 = arith.xori %29, %32 : vector<1x256xi1>
    %34 = arith.andi %33, %27 : vector<1x256xi1>
    %35 = vector.broadcast %23 : i32 to vector<1x256xi32>
    %36 = arith.addi %25, %35 : vector<1x256xi32>
    %37 = arith.select %34, %36, %25 : vector<1x256xi1>, vector<1x256xi32>
    %c16_i32 = arith.constant 16 : i32
    %38 = vector.broadcast %c16_i32 : i32 to vector<1x256xi32>
    %39 = arith.cmpi slt, %37, %38 : vector<1x256xi32>
    %40 = arith.extui %39 : vector<1x256xi1> to vector<1x256xi32>
    %41 = arith.sitofp %40 : vector<1x256xi32> to vector<1x256xf32>
    %c0_20 = arith.constant 0 : index
    %c0_21 = arith.constant 0 : index
    %42 = vector.load %arg4[%c0_20, %c0_21] : memref<48x1xf32, #tpu.memory_space<vmem>>, vector<16x1xf32>
    %c16 = arith.constant 16 : index
    %c0_22 = arith.constant 0 : index
    %43 = vector.load %arg4[%c16, %c0_22] : memref<48x1xf32, #tpu.memory_space<vmem>>, vector<16x1xf32>
    %44 = vector.broadcast %41 : vector<1x256xf32> to vector<16x256xf32>
    %45 = arith.mulf %20, %44 : vector<16x256xf32>
    %cst_23 = arith.constant dense<0.000000e+00> : vector<16xf32>
    %46 = vector.multi_reduction <add>, %45, %cst_23 [1] : vector<16x256xf32> to vector<16xf32>
    %47 = vector.shape_cast %46 : vector<16xf32> to vector<16x1xf32>
    %48 = arith.mulf %45, %20 : vector<16x256xf32>
    %cst_24 = arith.constant dense<0.000000e+00> : vector<16xf32>
    %49 = vector.multi_reduction <add>, %48, %cst_24 [1] : vector<16x256xf32> to vector<16xf32>
    %50 = vector.shape_cast %49 : vector<16xf32> to vector<16x1xf32>
    %cst_25 = arith.constant 3.125000e-02 : f32
    %51 = vector.broadcast %cst_25 : f32 to vector<16x1xf32>
    %52 = arith.mulf %47, %51 : vector<16x1xf32>
    %cst_26 = arith.constant 3.125000e-02 : f32
    %53 = vector.broadcast %cst_26 : f32 to vector<16x1xf32>
    %54 = arith.mulf %50, %53 : vector<16x1xf32>
    %55 = arith.mulf %52, %52 : vector<16x1xf32>
    %56 = arith.subf %54, %55 : vector<16x1xf32>
    %cst_27 = arith.constant 0.000000e+00 : f32
    %57 = vector.broadcast %cst_27 : f32 to vector<16x1xf32>
    %58 = arith.maximumf %56, %57 : vector<16x1xf32>
    %cst_28 = arith.constant 9.99999974E-6 : f32
    %59 = vector.broadcast %cst_28 : f32 to vector<16x1xf32>
    %60 = arith.addf %58, %59 : vector<16x1xf32>
    %61 = math.rsqrt %60 : vector<16x1xf32>
    %62 = arith.mulf %42, %61 : vector<16x1xf32>
    %63 = arith.mulf %52, %62 : vector<16x1xf32>
    %64 = arith.subf %43, %63 : vector<16x1xf32>
    %65 = vector.broadcast %62 : vector<16x1xf32> to vector<16x256xf32>
    %66 = arith.mulf %20, %65 : vector<16x256xf32>
    %67 = vector.broadcast %64 : vector<16x1xf32> to vector<16x256xf32>
    %68 = arith.addf %66, %67 : vector<16x256xf32>
    %69 = vector.extract_strided_slice %68 {offsets = [0, 0], sizes = [8, 256], strides = [1, 1]} : vector<16x256xf32> to vector<8x256xf32>
    %cst_29 = arith.constant 0.000000e+00 : f32
    %70 = vector.broadcast %cst_29 : f32 to vector<8x256xf32>
    %71 = arith.maximumf %69, %70 : vector<8x256xf32>
    %72 = vector.extract_strided_slice %68 {offsets = [8, 0], sizes = [8, 256], strides = [1, 1]} : vector<16x256xf32> to vector<8x256xf32>
    %cst_30 = arith.constant 0.000000e+00 : bf16
    %73 = vector.broadcast %cst_30 : bf16 to vector<8x128xbf16>
    %c0_31 = arith.constant 0 : index
    %c0_32 = arith.constant 0 : index
    %74 = vector.load %arg7[%c0_31, %c0_32] : memref<8x512xbf16, #tpu.memory_space<vmem>>, vector<8x128xbf16>
    tpu.vector_store %arg7[%c0_31, %c0_32], %73 {strides = array<i32>} : memref<8x512xbf16, #tpu.memory_space<vmem>>, vector<8x128xbf16>,
    %75 = vector.extract_strided_slice %71 {offsets = [0, 0], sizes = [8, 16], strides = [1, 1]} : vector<8x256xf32> to vector<8x16xf32>
    %76 = arith.truncf %75 : vector<8x16xf32> to vector<8x16xbf16>
    %c0_33 = arith.constant 0 : index
    %c128_34 = arith.constant 128 : index
    %77 = vector.load %arg7[%c0_33, %c128_34] : memref<8x512xbf16, #tpu.memory_space<vmem>>, vector<8x16xbf16>
    tpu.vector_store %arg7[%c0_33, %c128_34], %76 {strides = array<i32>} : memref<8x512xbf16, #tpu.memory_space<vmem>>, vector<8x16xbf16>,
    %cst_35 = arith.constant 0.000000e+00 : bf16
    %78 = vector.broadcast %cst_35 : bf16 to vector<8x112xbf16>
    %c0_36 = arith.constant 0 : index
    %c144_37 = arith.constant 144 : index
    %79 = vector.load %arg7[%c0_36, %c144_37] : memref<8x512xbf16, #tpu.memory_space<vmem>>, vector<8x112xbf16>
    tpu.vector_store %arg7[%c0_36, %c144_37], %78 {strides = array<i32>} : memref<8x512xbf16, #tpu.memory_space<vmem>>, vector<8x112xbf16>,
    %80 = vector.extract_strided_slice %71 {offsets = [0, 128], sizes = [8, 16], strides = [1, 1]} : vector<8x256xf32> to vector<8x16xf32>
    %81 = arith.truncf %80 : vector<8x16xf32> to vector<8x16xbf16>
    %c0_38 = arith.constant 0 : index
    %c256_39 = arith.constant 256 : index
    %82 = vector.load %arg7[%c0_38, %c256_39] : memref<8x512xbf16, #tpu.memory_space<vmem>>, vector<8x16xbf16>
    tpu.vector_store %arg7[%c0_38, %c256_39], %81 {strides = array<i32>} : memref<8x512xbf16, #tpu.memory_space<vmem>>, vector<8x16xbf16>,
    %cst_40 = arith.constant 0.000000e+00 : bf16
    %83 = vector.broadcast %cst_40 : bf16 to vector<8x240xbf16>
    %c0_41 = arith.constant 0 : index
    %c272_42 = arith.constant 272 : index
    %84 = vector.load %arg7[%c0_41, %c272_42] : memref<8x512xbf16, #tpu.memory_space<vmem>>, vector<8x240xbf16>
    tpu.vector_store %arg7[%c0_41, %c272_42], %83 {strides = array<i32>} : memref<8x512xbf16, #tpu.memory_space<vmem>>, vector<8x240xbf16>,
    %c0_43 = arith.constant 0 : index
    %c0_44 = arith.constant 0 : index
    %85 = vector.load %arg7[%c0_43, %c0_44] : memref<8x512xbf16, #tpu.memory_space<vmem>>, vector<8x512xbf16>
    %86 = vector.extract_strided_slice %85 {offsets = [0, 127], sizes = [8, 256], strides = [1, 1]} : vector<8x512xbf16> to vector<8x256xbf16>
    %87 = vector.extract_strided_slice %85 {offsets = [0, 128], sizes = [8, 256], strides = [1, 1]} : vector<8x512xbf16> to vector<8x256xbf16>
    %88 = vector.extract_strided_slice %85 {offsets = [0, 129], sizes = [8, 256], strides = [1, 1]} : vector<8x512xbf16> to vector<8x256xbf16>
    %89 = tpu.concatenate %86, %87, %88 in 0 : vector<8x256xbf16>, vector<8x256xbf16>, vector<8x256xbf16> -> vector<24x256xbf16>
    %c0_45 = arith.constant 0 : index
    %c0_46 = arith.constant 0 : index
    %90 = vector.load %arg3[%c0_45, %c0_46] : memref<8x24xbf16, #tpu.memory_space<vmem>>, vector<8x24xbf16>
    %cst_47 = arith.constant dense<0.000000e+00> : vector<8x256xf32>
    %91 = tpu.matmul %90, %89, %cst_47 {dimension_numbers = #tpu.dot_dimension_numbers<[1], [0], [0], [1], [0, 0, 1, 1], [], []>} : vector<8x24xbf16>, vector<24x256xbf16>, vector<8x256xf32> -> vector<8x256xf32>
    %c16_i32_48 = arith.constant 16 : i32
    %92 = vector.broadcast %c16_i32_48 : i32 to vector<1x256xi32>
    %93 = arith.cmpi slt, %37, %92 : vector<1x256xi32>
    %94 = arith.extui %93 : vector<1x256xi1> to vector<1x256xi32>
    %95 = arith.sitofp %94 : vector<1x256xi32> to vector<1x256xf32>
    %c32 = arith.constant 32 : index
    %c0_49 = arith.constant 0 : index
    %96 = vector.load %arg4[%c32, %c0_49] : memref<48x1xf32, #tpu.memory_space<vmem>>, vector<8x1xf32>
    %c40 = arith.constant 40 : index
    %c0_50 = arith.constant 0 : index
    %97 = vector.load %arg4[%c40, %c0_50] : memref<48x1xf32, #tpu.memory_space<vmem>>, vector<8x1xf32>
    %98 = vector.broadcast %95 : vector<1x256xf32> to vector<8x256xf32>
    %99 = arith.mulf %91, %98 : vector<8x256xf32>
    %cst_51 = arith.constant dense<0.000000e+00> : vector<8xf32>
    %100 = vector.multi_reduction <add>, %99, %cst_51 [1] : vector<8x256xf32> to vector<8xf32>
    %101 = vector.shape_cast %100 : vector<8xf32> to vector<8x1xf32>
    %102 = arith.mulf %99, %91 : vector<8x256xf32>
    %cst_52 = arith.constant dense<0.000000e+00> : vector<8xf32>
    %103 = vector.multi_reduction <add>, %102, %cst_52 [1] : vector<8x256xf32> to vector<8xf32>
    %104 = vector.shape_cast %103 : vector<8xf32> to vector<8x1xf32>
    %cst_53 = arith.constant 3.125000e-02 : f32
    %105 = vector.broadcast %cst_53 : f32 to vector<8x1xf32>
    %106 = arith.mulf %101, %105 : vector<8x1xf32>
    %cst_54 = arith.constant 3.125000e-02 : f32
    %107 = vector.broadcast %cst_54 : f32 to vector<8x1xf32>
    %108 = arith.mulf %104, %107 : vector<8x1xf32>
    %109 = arith.mulf %106, %106 : vector<8x1xf32>
    %110 = arith.subf %108, %109 : vector<8x1xf32>
    %cst_55 = arith.constant 0.000000e+00 : f32
    %111 = vector.broadcast %cst_55 : f32 to vector<8x1xf32>
    %112 = arith.maximumf %110, %111 : vector<8x1xf32>
    %cst_56 = arith.constant 9.99999974E-6 : f32
    %113 = vector.broadcast %cst_56 : f32 to vector<8x1xf32>
    %114 = arith.addf %112, %113 : vector<8x1xf32>
    %115 = math.rsqrt %114 : vector<8x1xf32>
    %116 = arith.mulf %96, %115 : vector<8x1xf32>
    %117 = arith.mulf %106, %116 : vector<8x1xf32>
    %118 = arith.subf %97, %117 : vector<8x1xf32>
    %119 = vector.broadcast %116 : vector<8x1xf32> to vector<8x256xf32>
    %120 = arith.mulf %91, %119 : vector<8x256xf32>
    %121 = vector.broadcast %118 : vector<8x1xf32> to vector<8x256xf32>
    %122 = arith.addf %120, %121 : vector<8x256xf32>
    %123 = arith.addf %122, %72 : vector<8x256xf32>
    %cst_57 = arith.constant 0.000000e+00 : f32
    %124 = vector.broadcast %cst_57 : f32 to vector<8x256xf32>
    %125 = arith.maximumf %123, %124 : vector<8x256xf32>
    %c0_58 = arith.constant 0 : index
    %c0_59 = arith.constant 0 : index
    %126 = vector.load %arg5[%c0_58, %c0_59] : memref<8x256xf32, #tpu.memory_space<vmem>>, vector<8x256xf32>
    tpu.vector_store %arg5[%c0_58, %c0_59], %125 {strides = array<i32>} : memref<8x256xf32, #tpu.memory_space<vmem>>, vector<8x256xf32>,
    return
  }
  func.func @transform_0(%arg0: i32) -> (i32, i32, i32) {
    %c0_i32 = arith.constant 0 : i32
    %c0_i32_0 = arith.constant 0 : i32
    %c0_i32_1 = arith.constant 0 : i32
    %c0_i32_2 = arith.constant 0 : i32
    return %c0_i32, %c0_i32_0, %c0_i32_1 : i32, i32, i32
  }
  func.func @transform_1(%arg0: i32) -> (i32, i32) {
    %c0_i32 = arith.constant 0 : i32
    %c0_i32_0 = arith.constant 0 : i32
    %c0_i32_1 = arith.constant 0 : i32
    return %c0_i32, %c0_i32_0 : i32, i32
  }
  func.func @transform_2(%arg0: i32) -> (i32, i32) {
    %c0_i32 = arith.constant 0 : i32
    %c0_i32_0 = arith.constant 0 : i32
    %c0_i32_1 = arith.constant 0 : i32
    return %c0_i32, %c0_i32_0 : i32, i32
  }
  func.func @transform_3(%arg0: i32) -> (i32, i32) {
    %c0_i32 = arith.constant 0 : i32
    %c0_i32_0 = arith.constant 0 : i32
    %c0_i32_1 = arith.constant 0 : i32
    return %c0_i32, %c0_i32_0 : i32, i32
  }
  func.func @transform_4(%arg0: i32) -> (i32, i32) {
    %c0_i32 = arith.constant 0 : i32
    %c0_i32_0 = arith.constant 0 : i32
    %c0_i32_1 = arith.constant 0 : i32
    return %c0_i32, %c0_i32_0 : i32, i32
  }
}

</mosaic_0001>

<llo_original>
// kernel: tpu_custom_call.1
$region0: #{tpu_custom_call.1}
  #allocation0 [shape = 'u32[]', space=smem, size = 0x4, offset = 0x4, fixed_abs, tag = 'smem constant byte address 0x4 - core index']
  #allocation1 [shape = 'u32[144,128]{1,0:T(1,128)}', space=vmem, size = 0x12000, scoped, tag = 'internal scratch']
  #allocation2 [shape = 'bf16[4,512]{1,0:T(4,128)(2,1)}', space=vmem, size = 0x1000, scoped, tag = 'scratch operand']
  #allocation3 [shape = 'bf16[8,512]{1,0:T(8,128)(2,1)}', space=vmem, size = 0x2000, scoped, tag = 'scratch operand']
  %s0 = inlined_call_operand.vmem [shape: f32[2,4,16], index: 0, kind: input, shape index: {}]
  %s1 = inlined_call_operand.vmem [shape: bf16[16,12], index: 1, kind: input, shape index: {}]
  %s2 = inlined_call_operand.vmem [shape: bf16[8,24], index: 2, kind: input, shape index: {}]
  %s3 = inlined_call_operand.vmem [shape: f32[48,1], index: 3, kind: input, shape index: {}]
  %s4 = inlined_call_operand.hbm [shape: f32[8,256], index: 4, kind: output, shape index: {}]
  %s5 = sld [smem:[#allocation0]]
  $region26: #{tpu_custom_call.1} parent=0
    _
  %s7 = ssub.s32 1, %s5
  %s8 = scalar_select 0, %s7, %s5
  $region1: #{tpu_custom_call.1} parent=0
    #allocation4 [shape = 'u8[8192]{0}', space=vmem, size = 0x2000, scoped, tag = 'output window, operand 0, single buffered']
    #allocation5 [shape = 's32[1]{0}', space=sflag, size = 0x4, scoped, tag = 'scoped memory for tpu_custom_call.1']
    %9 = vsyncpa [#allocation5], 0
    // Predicated region
    $region2: #{tpu_custom_call.1} parent=1 // pred_check
      _
    $region3: #{tpu_custom_call.1} parent=1 // pred_check_branch
      %11 = sbr.rel (0) target = $region5
    $region4: #{tpu_custom_call.1} parent=1 // pred_region
      _
    $region5: #{tpu_custom_call.1} parent=1 // pred_fallthru
      _
    // Predicated region
    $region6: #{tpu_custom_call.1} parent=1 // pred_check
      _
    $region7: #{tpu_custom_call.1} parent=1 // pred_check_branch
      %13 = sbr.rel (0) target = $region9
    $region8: #{tpu_custom_call.1} parent=1 // pred_region
      _
    $region9: #{tpu_custom_call.1} parent=1 // pred_fallthru
      _
    // Predicated region
    $region10: #{tpu_custom_call.1} parent=1 // pred_check
      _
    $region11: #{tpu_custom_call.1} parent=1 // pred_check_branch
      %15 = sbr.rel (0) target = $region13
    $region12: #{tpu_custom_call.1} parent=1 // pred_region
      _
    $region13: #{tpu_custom_call.1} parent=1 // pred_fallthru
      _
    // Predicated region
    $region14: #{tpu_custom_call.1} parent=1 // pred_check
      _
    $region15: #{tpu_custom_call.1} parent=1 // pred_check_branch
      %17 = sbr.rel (0) target = $region17
    $region16: #{tpu_custom_call.1} parent=1 // pred_region
      _
    $region17: #{tpu_custom_call.1} parent=1 // pred_fallthru
      _
    %19 = vst [vmem:[#allocation2] sm:$0x3] 0
    %v20 = vld [vmem:[%s0] sm:$0xf]
    %v21 = vpack.c.bf16 %v20, %v20
    %vm22 = vcmask 123904
    %23 = vst.msk [vmem:[#allocation2 + $0x2] sm:$0x3] %vm22, %v21
    %vm24 = vcmask 1041536
    %25 = vst.msk [vmem:[#allocation2 + $0x2] sm:$0x3] %vm24, 0
    %s26 = scalar_lea.vmem %s0, 4
    %v27 = vld [vmem:[%s26] sm:$0xf]
    %v28 = vpack.c.bf16 %v27, %v27
    %29 = vst.msk [vmem:[#allocation2 + $0x4] sm:$0x3] %vm22, %v28
    %vm30 = vcmask 1043458
    %vm31 = vmor %vm30, %vm24
    %32 = vst.msk [vmem:[#allocation2 + $0x4] sm:$0xf] %vm31, 0
    %v33 = vld [vmem:[#allocation2] sm:$0xff]
    %v35 = vcombine.high %v33, %v33
    %v37 = vunpack.c.l.s4 1983009808
    %v38 = vunpack.c.0.s8 %v37
    %v39 = vlaneseq
    %v40 = vshrl.u32 %v39, 7
    %v41 = vsub.s32 %v38, %v40
    %v42 = vrot.slane %v33, %v41
    %v44 = vunpack.c.l.s4 1983009808
    %v45 = vunpack.c.0.s8 %v44
    %v46 = vlaneseq
    %v47 = vshrl.u32 %v46, 7
    %v48 = vsub.s32 %v45, %v47
    %v49 = vrot.slane %v35, %v48
    %v50 = vcombine.high %v42, %v42
    %v51 = vcombine.low %v33, %v33
    %v53 = vunpack.c.l.s4 1983009808
    %v54 = vunpack.c.0.s8 %v53
    %v55 = vlaneseq
    %v56 = vshrl.u32 %v55, 7
    %v57 = vsub.s32 %v54, %v56
    %v58 = vrot.slane %v51, %v57
    %v59 = vcombine.high %v58, %v58
    %60 = vrot.lane.b32.xlu0 %v59, 127
    %v61 = vpop.permute.xlu0 %60
    %62 = vrot.lane.b32.xlu0 %v42, 127
    %v63 = vpop.permute.xlu0 %62
    %vm64 = vcmask 1039360
    %v65 = vsel %vm64, %v61, %v63
    %v66 = vcombine.low %v49, %v49
    %67 = vrot.lane.b32.xlu0 %v42, 126
    %v68 = vpop.permute.xlu0 %67
    %69 = vrot.lane.b32.xlu0 %v66, 126
    %v70 = vpop.permute.xlu0 %69
    %71 = vrot.lane.b32.xlu0 %v49, 126
    %v72 = vpop.permute.xlu0 %71
    %vm73 = vcmask 1031168
    %v74 = vsel %vm73, %v68, %v70
    %v75 = vsel %vm73, %v70, %v72
    %vm76 = vcmask 1041408
    %v79 = vsel %vm76, %v42, %v61
    %v82 = vsel %vm76, %v50, %v65
    %v85 = vsel %vm76, %v49, %v63
    %vm86 = vcmask 1043456
    %v88 = vsel %vm86, %v79, %v68
    %v90 = vsel %vm86, %v82, %v74
    %v92 = vsel %vm86, %v85, %v75
    %v93 = vld [vmem:[%s1] sm:$0xf]
    %v94 = vld [vmem:[%s1 + $0x4] sm:$0xf]
    %v97 = vunpack.c.l.b16 %v93
    %v98 = vunpack.c.l.b16 %v94
    %v99 = vpack.c.b16 %v98, %v97
    %103 = vrot.lane.b32.xlu0 %v88, 1
    %v104 = vpop.permute.xlu0 %103
    %105 = vrot.lane.b32.xlu0 %v90, 1
    %v106 = vpop.permute.xlu0 %105
    %107 = vrot.lane.b32.xlu0 %v92, 1
    %v108 = vpop.permute.xlu0 %107
    %vm109 = vcmask 7168
    %v110 = vsel %vm109, %v104, %v106
    %v111 = vsel %vm109, %v106, %v108
    %vm112 = vcmask 97280
    %v114 = vsel %vm112, %v99, 0
    %vm116 = vcmask 1045504
    %v118 = vsel %vm116, %v110, 0
    %v121 = vsel %vm116, %v111, 0
    %123 = vmatprep.subr.bf16.mxu0 %v121
    %124 = vmatpush1.bf16.msra.mxu0 %v118
    %125 = vmatprep.subr.bf16.mxu0 0
    %126 = vmatpush1.bf16.msra.mxu0 0
    %127 = vmatprep.subr.bf16.mxu0 0
    %128 = vmatpush1.bf16.msra.mxu0 0
    %129 = vmatprep.subr.bf16.mxu0 0
    %130 = vmatpush1.bf16.msra.mxu0 0
    %131 = vmatprep.subr.bf16.mxu0 0
    %132 = vmatpush1.bf16.msra.mxu0 0
    %133 = vmatprep.subr.bf16.mxu0 0
    %134 = vmatpush1.bf16.msra.mxu0 0
    %135 = vmatprep.subr.bf16.mxu0 0
    %136 = vmatpush1.bf16.msra.mxu0 0
    %137 = vmatprep.subr.bf16.mxu0 0
    %138 = vmatpush1.bf16.msra.mxu0 0
    %139 = vmatprep.subr.bf16.mxu0 0
    %140 = vmatpush1.bf16.msra.mxu0 0
    %141 = vmatprep.subr.bf16.mxu0 0
    %142 = vmatpush1.bf16.msra.mxu0 0
    %143 = vmatprep.subr.bf16.mxu0 0
    %144 = vmatpush1.bf16.msra.mxu0 0
    %145 = vmatprep.subr.bf16.mxu0 0
    %146 = vmatpush1.bf16.msra.mxu0 0
    %147 = vmatprep.subr.bf16.mxu0 0
    %148 = vmatpush1.bf16.msra.mxu0 0
    %149 = vmatprep.subr.bf16.mxu0 0
    %150 = vmatpush1.bf16.msra.mxu0 0
    %151 = vmatprep.subr.bf16.mxu0 0
    %152 = vmatpush1.bf16.msra.mxu0 0
    %153 = vmatprep.subr.bf16.mxu0 0
    %154 = vmatpush1.bf16.msra.mxu0 0
    %155 = vmatprep.mubr.bf16.mxu0 0
    %156 = vmatmul.mubr.bf16.gmra.mrb[0].mxu0 %v114
    %v157 = vpop.f32.mrb[0].mxu0
    %v158 = vadd.f32 0.0, %v157
    %v159 = vpop.f32.mrb[0].mxu0
    %v160 = vadd.f32 0.0, %v159
    %v161 = vpop.f32.mrb[0].mxu0
    %v162 = vadd.f32 0.0, %v161
    %v163 = vpop.f32.mrb[0].mxu0
    %v164 = vadd.f32 0.0, %v163
    %165 = vdwg.mxu0
    %v166 = vlaneseq
    %v167 = vand.u32 %v166, 127
    %v168 = vadd.s32 %v167, 128
    %vm169 = vcmp.lt.s32.totalorder %v167, 0
    %v170 = vsub.s32 0, %v167
    %v171 = vsel %vm169, %v170, %v167
    %v172 = vshrl.u32 %v171, 7
    %v173 = vand.u32 %v171, 127
    %v174 = vsub.s32 0, %v173
    %v175 = vsel %vm169, %v174, %v173
    %vm176 = vcmp.lt.s32.totalorder %v168, 0
    %v177 = vsub.s32 0, %v168
    %v178 = vsel %vm176, %v177, %v168
    %v179 = vshrl.u32 %v178, 7
    %v180 = vand.u32 %v178, 127
    %v181 = vsub.s32 0, %v180
    %v182 = vsel %vm176, %v181, %v180
    %vm183 = vcmp.ne.s32.totalorder %v175, 0
    %vm184 = vcmp.ne.s32.totalorder %v182, 0
    %vm185 = vcmp.lt.s32.totalorder %v175, 0
    %vm186 = vcmp.lt.s32.totalorder %v182, 0
    %vm187 = vmand %vm185, %vm183
    %vm188 = vmand %vm186, %vm184
    %v189 = vadd.s32 %v175, 128
    %v190 = vadd.s32 %v182, 128
    %v191 = vsel %vm187, %v189, %v175
    %v192 = vsel %vm188, %v190, %v182
    %vm193 = vcmp.lt.s32.totalorder %v191, 16
    %vm194 = vcmp.lt.s32.totalorder %v192, 16
    %v195 = vsel %vm193, 1, 0
    %v196 = vsel %vm194, 1, 0
    %v197 = vcvt.s32.f32 %v195
    %v198 = vcvt.s32.f32 %v196
    %v199 = vld [vmem:[%s3] sm:$0xff]
    %v200 = vld [vmem:[%s3 + $0x8] sm:$0xff]
    %v201 = vld [vmem:[%s3 + $0x10] sm:$0xff]
    %v202 = vld [vmem:[%s3 + $0x18] sm:$0xff]
    %v203 = vmul.f32 %v158, %v197
    %v204 = vmul.f32 %v160, %v198
    %v205 = vmul.f32 %v162, %v197
    %v206 = vmul.f32 %v164, %v198
    %v207 = vadd.f32 %v203, %v204
    %208 = vadd.xlane.f32.xlu0 %v207
    %v209 = vpop.xlane.xlu0 %208
    %v210 = vadd.f32 %v205, %v206
    %211 = vadd.xlane.f32.xlu0 %v210
    %v212 = vpop.xlane.xlu0 %211
    %v213 = vmul.f32 %v203, %v158
    %v214 = vmul.f32 %v204, %v160
    %v215 = vmul.f32 %v205, %v162
    %v216 = vmul.f32 %v206, %v164
    %v217 = vadd.f32 %v213, %v214
    %218 = vadd.xlane.f32.xlu0 %v217
    %v219 = vpop.xlane.xlu0 %218
    %v220 = vadd.f32 %v215, %v216
    %221 = vadd.xlane.f32.xlu0 %v220
    %v222 = vpop.xlane.xlu0 %221
    %v223 = vmul.f32 %v209, 0.03125
    %v224 = vmul.f32 %v212, 0.03125
    %v225 = vmul.f32 %v219, 0.03125
    %v226 = vmul.f32 %v222, 0.03125
    %v227 = vmul.f32 %v223, %v223
    %v228 = vmul.f32 %v224, %v224
    %v229 = vsub.f32 %v225, %v227
    %v230 = vsub.f32 %v226, %v228
    %v231 = vmax.f32 %v229, 0.0
    %v232 = vmax.f32 %v230, 0.0
    %v233 = vadd.f32 %v231, 1e-05
    %v234 = vadd.f32 %v232, 1e-05
    %v235 = vrsqrt.pop %v233
    %v236 = vrsqrt.pop %v234
    %v237 = vmul.f32 %v199, %v235
    %v238 = vmul.f32 %v200, %v236
    %v239 = vmul.f32 %v223, %v237
    %v240 = vmul.f32 %v224, %v238
    %v241 = vsub.f32 %v201, %v239
    %v242 = vsub.f32 %v202, %v240
    %244 = vset.pattern.permute.xlu0 0
    %245 = vperm.xlu0 %244, %v237
    %v246 = vpop.permute.xlu0 %245
    %249 = vset.pattern.permute.xlu0 0
    %250 = vperm.xlu0 %249, %v238
    %v251 = vpop.permute.xlu0 %250
    %v253 = vmul.f32 %v158, %v246
    %v254 = vmul.f32 %v160, %v246
    %v255 = vmul.f32 %v162, %v251
    %v256 = vmul.f32 %v164, %v251
    %258 = vset.pattern.permute.xlu0 0
    %259 = vperm.xlu0 %258, %v241
    %v260 = vpop.permute.xlu0 %259
    %263 = vset.pattern.permute.xlu0 0
    %264 = vperm.xlu0 %263, %v242
    %v265 = vpop.permute.xlu0 %264
    %v267 = vadd.f32 %v253, %v260
    %v268 = vadd.f32 %v254, %v260
    %v269 = vadd.f32 %v255, %v265
    %v270 = vadd.f32 %v256, %v265
    %v271 = vmax.f32 %v267, 0.0
    %v272 = vmax.f32 %v268, 0.0
    %273 = vst [vmem:[#allocation3] sm:$0xf] 0
    %v274 = vpack.c.bf16 %v271, %v271
    %vm275 = vcmask 125952
    %276 = vst.msk [vmem:[#allocation3 + $0x4] sm:$0xf] %vm275, %v274
    %vm277 = vcmask 1043584
    %278 = vst.msk [vmem:[#allocation3 + $0x4] sm:$0xf] %vm277, 0
    %v279 = vpack.c.bf16 %v272, %v272
    %280 = vst.msk [vmem:[#allocation3 + $0x8] sm:$0xf] %vm275, %v279
    %vm281 = vcmask 1047556
    %vm282 = vmor %vm281, %vm277
    %283 = vst.msk [vmem:[#allocation3 + $0x8] sm:$0xff] %vm282, 0
    %v284 = vld [vmem:[#allocation3] sm:$0xff]
    %v285 = vld [vmem:[#allocation3 + $0x8] sm:$0xff]
    %v288 = vunpack.c.l.b16 %v284
    %v289 = vunpack.c.h.b16 %v284
    %v290 = vunpack.c.l.b16 %v285
    %v291 = vpack.c.b16 %v288, %v288
    %v292 = vpack.c.b16 %v289, %v289
    %v293 = vpack.c.b16 %v290, %v290
    %294 = vrot.lane.b32.xlu0 %v292, 127
    %v295 = vpop.permute.xlu0 %294
    %296 = vrot.lane.b32.xlu0 %v293, 127
    %v297 = vpop.permute.xlu0 %296
    %v298 = vsel %vm64, %v295, %v297
    %v299 = vunpack.c.h.b16 %v285
    %v300 = vpack.c.b16 %v299, %v299
    %301 = vrot.lane.b32.xlu0 %v292, 126
    %v302 = vpop.permute.xlu0 %301
    %303 = vrot.lane.b32.xlu0 %v293, 126
    %v304 = vpop.permute.xlu0 %303
    %305 = vrot.lane.b32.xlu0 %v300, 126
    %v306 = vpop.permute.xlu0 %305
    %v307 = vsel %vm73, %v302, %v304
    %v308 = vsel %vm73, %v304, %v306
    %v311 = vsel %vm86, %v291, %v295
    %v314 = vsel %vm86, %v292, %v298
    %v317 = vsel %vm86, %v293, %v297
    %v318 = vld [vmem:[%s2] sm:$0xf]
    %322 = vrot.lane.b32.xlu0 %v311, 1
    %v323 = vpop.permute.xlu0 %322
    %324 = vrot.lane.b32.xlu0 %v314, 1
    %v325 = vpop.permute.xlu0 %324
    %326 = vrot.lane.b32.xlu0 %v317, 1
    %v327 = vpop.permute.xlu0 %326
    %328 = vrot.lane.b32.xlu0 %v302, 1
    %v329 = vpop.permute.xlu0 %328
    %330 = vrot.lane.b32.xlu0 %v307, 1
    %v331 = vpop.permute.xlu0 %330
    %332 = vrot.lane.b32.xlu0 %v308, 1
    %v333 = vpop.permute.xlu0 %332
    %v334 = vsel %vm109, %v323, %v325
    %v335 = vsel %vm109, %v325, %v327
    %v336 = vsel %vm109, %v329, %v331
    %v337 = vsel %vm109, %v331, %v333
    %vm340 = vcmask 195584
    %v342 = vsel %vm340, %v318, 0
    %v345 = vsel %vm86, %v336, 0
    %v348 = vsel %vm86, %v337, 0
    %350 = vmatprep.subr.bf16.mxu0 %v335
    %351 = vmatpush1.bf16.msra.mxu0 %v334
    %352 = vmatprep.subr.bf16.mxu0 %v348
    %353 = vmatpush1.bf16.msra.mxu0 %v345
    %354 = vmatprep.subr.bf16.mxu0 0
    %355 = vmatpush1.bf16.msra.mxu0 0
    %356 = vmatprep.subr.bf16.mxu0 0
    %357 = vmatpush1.bf16.msra.mxu0 0
    %358 = vmatprep.subr.bf16.mxu0 0
    %359 = vmatpush1.bf16.msra.mxu0 0
    %360 = vmatprep.subr.bf16.mxu0 0
    %361 = vmatpush1.bf16.msra.mxu0 0
    %362 = vmatprep.subr.bf16.mxu0 0
    %363 = vmatpush1.bf16.msra.mxu0 0
    %364 = vmatprep.subr.bf16.mxu0 0
    %365 = vmatpush1.bf16.msra.mxu0 0
    %366 = vmatprep.subr.bf16.mxu0 0
    %367 = vmatpush1.bf16.msra.mxu0 0
    %368 = vmatprep.subr.bf16.mxu0 0
    %369 = vmatpush1.bf16.msra.mxu0 0
    %370 = vmatprep.subr.bf16.mxu0 0
    %371 = vmatpush1.bf16.msra.mxu0 0
    %372 = vmatprep.subr.bf16.mxu0 0
    %373 = vmatpush1.bf16.msra.mxu0 0
    %374 = vmatprep.subr.bf16.mxu0 0
    %375 = vmatpush1.bf16.msra.mxu0 0
    %376 = vmatprep.subr.bf16.mxu0 0
    %377 = vmatpush1.bf16.msra.mxu0 0
    %378 = vmatprep.subr.bf16.mxu0 0
    %379 = vmatpush1.bf16.msra.mxu0 0
    %380 = vmatprep.subr.bf16.mxu0 0
    %381 = vmatpush1.bf16.msra.mxu0 0
    %382 = vmatprep.mubr.bf16.mxu0 0
    %383 = vmatmul.mubr.bf16.gmra.mrb[0].mxu0 %v342
    %v384 = vpop.f32.mrb[0].mxu0
    %v385 = vadd.f32 0.0, %v384
    %v386 = vpop.f32.mrb[0].mxu0
    %v387 = vadd.f32 0.0, %v386
    %v388 = vpop.f32.mrb[0].mxu0
    %v389 = vpop.f32.mrb[0].mxu0
    %390 = vdwg.mxu0
    %v391 = vld [vmem:[%s3 + $0x20] sm:$0xff]
    %v392 = vld [vmem:[%s3 + $0x28] sm:$0xff]
    %v393 = vmul.f32 %v385, %v197
    %v394 = vmul.f32 %v387, %v198
    %v395 = vadd.f32 %v393, %v394
    %396 = vadd.xlane.f32.xlu0 %v395
    %v397 = vpop.xlane.xlu0 %396
    %v398 = vmul.f32 %v393, %v385
    %v399 = vmul.f32 %v394, %v387
    %v400 = vadd.f32 %v398, %v399
    %401 = vadd.xlane.f32.xlu0 %v400
    %v402 = vpop.xlane.xlu0 %401
    %v403 = vmul.f32 %v397, 0.03125
    %v404 = vmul.f32 %v402, 0.03125
    %v405 = vmul.f32 %v403, %v403
    %v406 = vsub.f32 %v404, %v405
    %v407 = vmax.f32 %v406, 0.0
    %v408 = vadd.f32 %v407, 1e-05
    %v409 = vrsqrt.pop %v408
    %v410 = vmul.f32 %v391, %v409
    %v411 = vmul.f32 %v403, %v410
    %v412 = vsub.f32 %v392, %v411
    %414 = vset.pattern.permute.xlu0 0
    %415 = vperm.xlu0 %414, %v410
    %v416 = vpop.permute.xlu0 %415
    %v418 = vmul.f32 %v385, %v416
    %v419 = vmul.f32 %v387, %v416
    %421 = vset.pattern.permute.xlu0 0
    %422 = vperm.xlu0 %421, %v412
    %v423 = vpop.permute.xlu0 %422
    %v425 = vadd.f32 %v418, %v423
    %v426 = vadd.f32 %v419, %v423
    %v427 = vadd.f32 %v425, %v269
    %v428 = vadd.f32 %v426, %v270
    %v429 = vmax.f32 %v427, 0.0
    %v430 = vmax.f32 %v428, 0.0
    %431 = vst [vmem:[#allocation4] sm:$0xff] %v429
    %432 = vst [vmem:[#allocation4 + $0x8] sm:$0xff] %v430
    // Predicated region
    $region18: #{tpu_custom_call.1} parent=1 // pred_check
      _
    $region19: #{tpu_custom_call.1} parent=1 // pred_check_branch
      %434 = sbr.rel (0) target = $region21
    $region20: #{tpu_custom_call.1} parent=1 // pred_region
      %s436 = ssub.s32 256, 256
      %437 = vsyncadd [#allocation5], %s436
      %s439 = sshll.u32 [#allocation4], 4
      %s440 = int_to_ptr.vmem [resolvable:$true] %s439
      %442 = dma.vmem_to_hbm [thread:$0]  %s440, 256, %s4, [#allocation5]
    $region21: #{tpu_custom_call.1} parent=1 // pred_fallthru
      _
    // Predicated region
    $region22: #{tpu_custom_call.1} parent=1 // pred_check
      _
    $region23: #{tpu_custom_call.1} parent=1 // pred_check_branch
      %444 = sbr.rel (0) target = $region25
    $region24: #{tpu_custom_call.1} parent=1 // pred_region
      %445 = dma.done [#allocation5], 256
    $region25: #{tpu_custom_call.1} parent=1 // pred_fallthru
      _
    %446 = vsyncpa [#allocation5], 1

</llo_original>
